<compile_context>
chip_gen: v7x
topology: tpu7x:2x2x1
jax: 0.10.0
libtpu: 0.0.40
codegen_flags: <defaults>
</compile_context>

<pallas_src>
import functools

import jax
import jax.numpy as jnp
from jax.experimental import pallas as pl
from jax.experimental.pallas import tpu as pltpu


_LANE = 128      # lane width: last block dim should be a multiple of this
_SUBLANE = 8     # f32 sublane count


def _round_up(n, m):
    return ((n + m - 1) // m) * m


def _pad2(a, rows, cols):
    pr, pc = rows - a.shape[0], cols - a.shape[1]
    if pr == 0 and pc == 0:
        return a
    return jnp.pad(a, ((0, pr), (0, pc)))


def _tpu_vmem_capacity_bytes():
    try:
        return int(pltpu.get_tpu_info().vmem_capacity_bytes)
    except Exception:
        return 64 * 1024 * 1024   # conservative default: v7x-class per-core VMEM


def _vmem_budget_and_cap():
    """(tile budget, vmem_limit cap, two_tensorcores?) for this generation."""
    cap = _tpu_vmem_capacity_bytes()
    if cap >= 100 * 1024 * 1024:                       # v5e / v6e: 128 MiB VMEM, 1 TC
        return 96 * 1024 * 1024, 100 * 1024 * 1024, False
    return 40 * 1024 * 1024, 48 * 1024 * 1024, True    # v7x: 64 MiB / TC, 2 TCs


@functools.lru_cache(maxsize=None)
def _single_buffer_supported():
    """Probe once whether pipeline_mode=pl.Buffered(1) is accepted on this build."""
    def _copy(x_ref, o_ref):
        o_ref[...] = x_ref[...]

    try:
        fn = pl.pallas_call(
            _copy,
            out_shape=jax.ShapeDtypeStruct((16, 128), jnp.float32),
            grid_spec=pltpu.PrefetchScalarGridSpec(
                num_scalar_prefetch=0,
                grid=(2,),
                in_specs=[pl.BlockSpec((8, 128), lambda i: (0, 0),
                                       pipeline_mode=pl.Buffered(1))],
                out_specs=pl.BlockSpec((8, 128), lambda i: (i, 0)),
            ),
        )
        jax.block_until_ready(fn(jnp.zeros((8, 128), jnp.float32)))
        return True
    except Exception:
        return False


def _pick_block_b(batch, d_pad, x_itemsize, w_itemsize, budget, two_cores):
    """Largest batch tile (multiple of 8) fitting the VMEM budget.

    Weights/bias are counted single-buffered (pl.Buffered(1)); x/out tiles are
    double-buffered; f32 epilogue temporaries are modeled at ~3x the fused
    intermediate.  On v7x the grid is forced to an even number of steps so the
    parallel axis shards evenly across the two TensorCores.
    """
    w_bytes = d_pad * 2 * d_pad * w_itemsize + 2 * d_pad * 4   # single-buffered
    b_cap = _round_up(max(batch, 1), _SUBLANE)
    block = _SUBLANE
    for cand in (8, 16, 32, 64, 128, 256, 512, 1024, 2048, 4096, 8192):
        if cand > b_cap:
            break
        tile_bytes = 4 * cand * d_pad * x_itemsize   # x + out tiles, double-buffered
        tile_bytes += 24 * cand * d_pad              # fused f32 result + epilogue temps
        if w_bytes + tile_bytes <= budget:
            block = cand

    if two_cores:
        grid = -(-batch // block)
        if grid == 1 and batch >= 2 * _SUBLANE:
            # split in two so both v7x TensorCores get work
            block = _round_up(-(-batch // 2), _SUBLANE)
        elif grid > 1 and grid % 2 == 1:
            cand = _round_up(-(-batch // (grid + 1)), _SUBLANE)
            if cand >= _SUBLANE and (-(-batch // cand)) % 2 == 0:
                block = cand
    return block


def _reciprocal_layer_kernel(x_ref, w_ref, b_ref, o_ref, *, d_pad):
    x = x_ref[...]                                   # native dtype (bf16 fast MXU path)

    # One fused MXU matmul: [tb, d] @ [d, 2d] -> [numerator | denominator] lanes,
    # accumulated in f32; fused bias added in f32.
    fused = jnp.dot(x, w_ref[...], preferred_element_type=jnp.float32) + b_ref[...]
    numerator = fused[:, :d_pad]
    denominator = fused[:, d_pad:]

    # torch: reciprocal().nan_to_num().clip(max=1000, min=-1000)
    #   NaN -> 0 ; +/-inf -> finfo.max -> clipped to +/-1000.
    recip = 1.0 / denominator
    recip = jnp.where(jnp.isnan(recip), jnp.float32(0.0), recip)
    recip = jnp.clip(recip, -1000.0, 1000.0)
    # NOTE: pl.reciprocal(approx=True) would move the divide to the EUP slot,
    # but only matters if VALU-bound and slightly changes numerics near the
    # clip threshold; exact divide kept (kernel is HBM-bandwidth bound).

    o_ref[...] = (x.astype(jnp.float32) + numerator * recip).astype(o_ref.dtype)


@jax.jit
def reciprocal_layer(x, wn_t, bn, wd_t, bd):
    """ReciprocalLayer forward.

    x:            [..., D]
    wn_t, wd_t:   [D, D]  numerator / denominator weights, pre-transposed
                  (so x @ wn_t == nn.Linear(x))
    bn, bd:       [D]     biases
    """
    orig_shape = x.shape
    D = orig_shape[-1]
    x2 = x.reshape(-1, D)
    B = x2.shape[0]

    compute_dtype = x2.dtype
    d_pad = _round_up(D, _LANE)

    # Fused, lane-padded weights [d_pad, 2*d_pad] in the compute dtype; fused
    # bias kept in f32 [1, 2*d_pad]. Padded rows/cols are exact zeros.
    w = jnp.concatenate(
        [_pad2(wn_t.astype(compute_dtype), d_pad, d_pad),
         _pad2(wd_t.astype(compute_dtype), d_pad, d_pad)], axis=1)
    b = jnp.concatenate(
        [_pad2(bn.reshape(1, D).astype(jnp.float32), 1, d_pad),
         _pad2(bd.reshape(1, D).astype(jnp.float32), 1, d_pad)], axis=1)

    # Only zero-pad the activations' feature dim when D is not lane-aligned
    # (padded K columns feed the matmul and must be exact zeros).  Batch is
    # never padded: Pallas masks the partial last block's stores.
    x_in = x2 if d_pad == D else jnp.pad(x2, ((0, 0), (0, d_pad - D)))

    budget, limit_cap, two_cores = _vmem_budget_and_cap()
    block_b = _pick_block_b(B, d_pad, x2.dtype.itemsize, w.dtype.itemsize,
                            budget, two_cores)
    grid_b = pl.cdiv(B, block_b)

    # weights+bias single-buffered, x/out tiles double-buffered, f32 epilogue temps
    w_bytes = d_pad * 2 * d_pad * w.dtype.itemsize + 2 * d_pad * 4
    est_vmem = (4 * block_b * d_pad * x2.dtype.itemsize
                + w_bytes
                + 24 * block_b * d_pad)
    vmem_limit = int(min(max(est_vmem + (8 << 20), 32 << 20), limit_cap))

    resident = ({"pipeline_mode": pl.Buffered(1)}
                if _single_buffer_supported() else {})

    out = pl.pallas_call(
        functools.partial(_reciprocal_layer_kernel, d_pad=d_pad),
        out_shape=jax.ShapeDtypeStruct((B, d_pad), compute_dtype),
        grid_spec=pltpu.PrefetchScalarGridSpec(
            num_scalar_prefetch=0,
            grid=(grid_b,),
            in_specs=[
                pl.BlockSpec((block_b, d_pad), lambda i: (i, 0)),               # x tile
                pl.BlockSpec((d_pad, 2 * d_pad), lambda i: (0, 0), **resident),  # [Wn^T|Wd^T]
                pl.BlockSpec((1, 2 * d_pad), lambda i: (0, 0), **resident),      # [bn|bd]
            ],
            out_specs=pl.BlockSpec((block_b, d_pad), lambda i: (i, 0)),
        ),
        compiler_params=pltpu.CompilerParams(
            dimension_semantics=("parallel",),
            vmem_limit_bytes=vmem_limit,
        ),
    )(x_in, w, b)

    if d_pad != D:
        out = out[:, :D]
    return out.reshape(orig_shape)


def init_params(key, dim, dtype=jnp.float32):
    """nn.Linear default init (uniform +/- 1/sqrt(dim)); weights returned pre-transposed."""
    k1, k2, k3, k4 = jax.random.split(key, 4)
    bound = 1.0 / (dim ** 0.5)
    wn = jax.random.uniform(k1, (dim, dim), dtype, -bound, bound)   # torch weight [out, in]
    bn = jax.random.uniform(k2, (dim,), dtype, -bound, bound)
    wd = jax.random.uniform(k3, (dim, dim), dtype, -bound, bound)
    bd = jax.random.uniform(k4, (dim,), dtype, -bound, bound)
    return wn.T, bn, wd.T, bd


def reference(x, wn_t, bn, wd_t, bd):
    num = x @ wn_t + bn
    den = x @ wd_t + bd
    r = jnp.clip(jnp.nan_to_num(1.0 / den), -1000.0, 1000.0)
    return x + num * r


if __name__ == "__main__":
    key = jax.random.PRNGKey(0)
    k_x, k_p = jax.random.split(key)

    # --- Small demo (module-spec shape), f32, tight tolerance, D not lane-aligned ---
    batch, dim = 8, 32
    x = jax.random.normal(k_x, (batch, dim), jnp.float32)
    wn_t, bn, wd_t, bd = init_params(k_p, dim)

    out = reciprocal_layer(x, wn_t, bn, wd_t, bd)
    out = jax.block_until_ready(out)
    ref = reference(x, wn_t, bn, wd_t, bd)
    assert out.shape == (batch, dim) and out.dtype == x.dtype
    assert jnp.allclose(out, ref, atol=1e-5, rtol=1e-5), "f32 mismatch vs reference"

    # --- Larger bf16 run: lane-aligned D=256 (no pad / no slice path), fused
    #     [D,2D] bf16 MXU matmul, and (on v7x) an even 2-step grid across the
    #     two TensorCores.  Denominator bias shifted away from 0 so the bf16
    #     comparison is well conditioned. ---
    k_x2, k_p2 = jax.random.split(jax.random.PRNGKey(1))
    B2, D2 = 512, 256
    x2 = jax.random.normal(k_x2, (B2, D2), jnp.float32).astype(jnp.bfloat16)
    wn2, bn2, wd2, bd2 = init_params(k_p2, D2)
    bd2 = bd2 + 5.0
    wn2_bf = wn2.astype(jnp.bfloat16)
    wd2_bf = wd2.astype(jnp.bfloat16)

    out2 = reciprocal_layer(x2, wn2_bf, bn2, wd2_bf, bd2)
    out2 = jax.block_until_ready(out2)
    ref2 = reference(x2.astype(jnp.float32), wn2_bf.astype(jnp.float32), bn2,
                     wd2_bf.astype(jnp.float32), bd2)
    assert out2.shape == (B2, D2) and out2.dtype == jnp.bfloat16
    max_err = float(jnp.max(jnp.abs(out2.astype(jnp.float32) - ref2)))
    assert max_err < 5e-2, f"bf16 mismatch vs reference (max_err={max_err})"

    print("KERNEL_OK")
</pallas_src>

<mosaic_0001>
module attributes {stable_mosaic.version = 11 : i64} {
  func.func @_reciprocal_layer_kernel(%arg0: i32, %arg1: memref<8x128xf32, #tpu.memory_space<vmem>>, %arg2: memref<128x256xf32, #tpu.memory_space<vmem>>, %arg3: memref<1x256xf32, #tpu.memory_space<vmem>>, %arg4: memref<8x128xf32, #tpu.memory_space<vmem>>) attributes {dimension_semantics = [#tpu.dimension_semantics<parallel>], iteration_bounds = array<i64: 1>, scalar_prefetch = 0 : i64, scratch_operands = 0 : i64, tpu.core_type = #tpu.core_type<tc>, window_params = [{transform_indices = @transform_0, window_bounds = array<i64: 8, 128>}, {pipeline_mode = #tpu.pipeline_mode<synchronous>, transform_indices = @transform_1, window_bounds = array<i64: 128, 256>}, {pipeline_mode = #tpu.pipeline_mode<synchronous>, transform_indices = @transform_2, window_bounds = array<i64: 1, 256>}, {transform_indices = @transform_3, window_bounds = array<i64: 8, 128>}]} {
    %c0 = arith.constant 0 : index
    %c0_0 = arith.constant 0 : index
    %0 = vector.load %arg1[%c0, %c0_0] : memref<8x128xf32, #tpu.memory_space<vmem>>, vector<8x128xf32>
    %c0_1 = arith.constant 0 : index
    %c0_2 = arith.constant 0 : index
    %1 = vector.load %arg2[%c0_1, %c0_2] : memref<128x256xf32, #tpu.memory_space<vmem>>, vector<128x256xf32>
    %cst = arith.constant dense<0.000000e+00> : vector<8x256xf32>
    %2 = tpu.matmul %0, %1, %cst {dimension_numbers = #tpu.dot_dimension_numbers<[1], [0], [0], [1], [0, 0, 1, 1], [], []>} : vector<8x128xf32>, vector<128x256xf32>, vector<8x256xf32> -> vector<8x256xf32>
    %c0_3 = arith.constant 0 : index
    %c0_4 = arith.constant 0 : index
    %3 = vector.load %arg3[%c0_3, %c0_4] : memref<1x256xf32, #tpu.memory_space<vmem>>, vector<1x256xf32>
    %4 = vector.broadcast %3 : vector<1x256xf32> to vector<8x256xf32>
    %5 = arith.addf %2, %4 : vector<8x256xf32>
    %6 = vector.extract_strided_slice %5 {offsets = [0, 0], sizes = [8, 128], strides = [1, 1]} : vector<8x256xf32> to vector<8x128xf32>
    %7 = vector.extract_strided_slice %5 {offsets = [0, 128], sizes = [8, 128], strides = [1, 1]} : vector<8x256xf32> to vector<8x128xf32>
    %cst_5 = arith.constant 1.000000e+00 : f32
    %8 = vector.broadcast %cst_5 : f32 to vector<8x128xf32>
    %9 = arith.divf %8, %7 : vector<8x128xf32>
    %10 = arith.cmpf one, %9, %9 : vector<8x128xf32>
    %cst_6 = arith.constant 0.000000e+00 : f32
    %11 = vector.broadcast %cst_6 : f32 to vector<8x128xf32>
    %12 = arith.select %10, %11, %9 : vector<8x128xi1>, vector<8x128xf32>
    %cst_7 = arith.constant -1.000000e+03 : f32
    %cst_8 = arith.constant 1.000000e+03 : f32
    %13 = vector.broadcast %cst_7 : f32 to vector<8x128xf32>
    %14 = arith.maximumf %13, %12 : vector<8x128xf32>
    %15 = vector.broadcast %cst_8 : f32 to vector<8x128xf32>
    %16 = arith.minimumf %15, %14 : vector<8x128xf32>
    %17 = arith.mulf %6, %16 : vector<8x128xf32>
    %18 = arith.addf %0, %17 : vector<8x128xf32>
    %c0_9 = arith.constant 0 : index
    %c0_10 = arith.constant 0 : index
    %19 = vector.load %arg4[%c0_9, %c0_10] : memref<8x128xf32, #tpu.memory_space<vmem>>, vector<8x128xf32>
    tpu.vector_store %arg4[%c0_9, %c0_10], %18 {strides = array<i32>} : memref<8x128xf32, #tpu.memory_space<vmem>>, vector<8x128xf32>,
    return
  }
  func.func @transform_0(%arg0: i32) -> (i32, i32) {
    %c0_i32 = arith.constant 0 : i32
    %c0_i32_0 = arith.constant 0 : i32
    return %arg0, %c0_i32 : i32, i32
  }
  func.func @transform_1(%arg0: i32) -> (i32, i32) {
    %c0_i32 = arith.constant 0 : i32
    %c0_i32_0 = arith.constant 0 : i32
    %c0_i32_1 = arith.constant 0 : i32
    return %c0_i32, %c0_i32_0 : i32, i32
  }
  func.func @transform_2(%arg0: i32) -> (i32, i32) {
    %c0_i32 = arith.constant 0 : i32
    %c0_i32_0 = arith.constant 0 : i32
    %c0_i32_1 = arith.constant 0 : i32
    return %c0_i32, %c0_i32_0 : i32, i32
  }
  func.func @transform_3(%arg0: i32) -> (i32, i32) {
    %c0_i32 = arith.constant 0 : i32
    %c0_i32_0 = arith.constant 0 : i32
    return %arg0, %c0_i32 : i32, i32
  }
}

</mosaic_0001>

<llo_original>
// kernel: reciprocal_layer.1
$region0: #{reciprocal_layer.1}
  #allocation0 [shape = 'u32[]', space=smem, size = 0x4, offset = 0x4, fixed_abs, tag = 'smem constant byte address 0x4 - core index']
  #allocation1 [shape = 'u32[144,128]{1,0:T(1,128)}', space=vmem, size = 0x12000, scoped, tag = 'internal scratch']
  %s0 = inlined_call_operand.vmem [shape: f32[8,128], index: 0, kind: input, shape index: {}]
  %s1 = inlined_call_operand.vmem [shape: f32[128,256], index: 1, kind: input, shape index: {}]
  %s2 = inlined_call_operand.vmem [shape: f32[1,256], index: 2, kind: input, shape index: {}]
  %s3 = inlined_call_operand.hbm [shape: f32[8,128], index: 3, kind: output, shape index: {}]
  %s4 = sld [smem:[#allocation0]]
  $region22: #{reciprocal_layer.1} parent=0
    _
  %s6 = ssub.s32 1, %s4
  %s7 = scalar_select 0, %s6, %s4
  $region1: #{reciprocal_layer.1} parent=0
    #allocation2 [shape = 'u8[4096]{0}', space=vmem, size = 0x1000, scoped, tag = 'output window, operand 0, single buffered']
    #allocation3 [shape = 's32[1]{0}', space=sflag, size = 0x4, scoped, tag = 'scoped memory for reciprocal_layer.1']
    %8 = vsyncpa [#allocation3], 0
    // Predicated region
    $region2: #{reciprocal_layer.1} parent=1 // pred_check
      _
    $region3: #{reciprocal_layer.1} parent=1 // pred_check_branch
      %10 = sbr.rel (0) target = $region5
    $region4: #{reciprocal_layer.1} parent=1 // pred_region
      _
    $region5: #{reciprocal_layer.1} parent=1 // pred_fallthru
      _
    // Predicated region
    $region6: #{reciprocal_layer.1} parent=1 // pred_check
      _
    $region7: #{reciprocal_layer.1} parent=1 // pred_check_branch
      %12 = sbr.rel (0) target = $region9
    $region8: #{reciprocal_layer.1} parent=1 // pred_region
      _
    $region9: #{reciprocal_layer.1} parent=1 // pred_fallthru
      _
    // Predicated region
    $region10: #{reciprocal_layer.1} parent=1 // pred_check
      _
    $region11: #{reciprocal_layer.1} parent=1 // pred_check_branch
      %14 = sbr.rel (0) target = $region13
    $region12: #{reciprocal_layer.1} parent=1 // pred_region
      _
    $region13: #{reciprocal_layer.1} parent=1 // pred_fallthru
      _
    %v15 = vld [vmem:[%s0] sm:$0xff]
    %v16 = vld [vmem:[%s1] sm:$0xff]
    %v17 = vld [vmem:[%s1 + $0x8] sm:$0xff]
    %v18 = vld [vmem:[%s1 + $0x10] sm:$0xff]
    %v19 = vld [vmem:[%s1 + $0x18] sm:$0xff]
    %v20 = vld [vmem:[%s1 + $0x20] sm:$0xff]
    %v21 = vld [vmem:[%s1 + $0x28] sm:$0xff]
    %v22 = vld [vmem:[%s1 + $0x30] sm:$0xff]
    %v23 = vld [vmem:[%s1 + $0x38] sm:$0xff]
    %v24 = vld [vmem:[%s1 + $0x40] sm:$0xff]
    %v25 = vld [vmem:[%s1 + $0x48] sm:$0xff]
    %v26 = vld [vmem:[%s1 + $0x50] sm:$0xff]
    %v27 = vld [vmem:[%s1 + $0x58] sm:$0xff]
    %v28 = vld [vmem:[%s1 + $0x60] sm:$0xff]
    %v29 = vld [vmem:[%s1 + $0x68] sm:$0xff]
    %v30 = vld [vmem:[%s1 + $0x70] sm:$0xff]
    %v31 = vld [vmem:[%s1 + $0x78] sm:$0xff]
    %v32 = vld [vmem:[%s1 + $0x80] sm:$0xff]
    %v33 = vld [vmem:[%s1 + $0x88] sm:$0xff]
    %v34 = vld [vmem:[%s1 + $0x90] sm:$0xff]
    %v35 = vld [vmem:[%s1 + $0x98] sm:$0xff]
    %v36 = vld [vmem:[%s1 + $0xa0] sm:$0xff]
    %v37 = vld [vmem:[%s1 + $0xa8] sm:$0xff]
    %v38 = vld [vmem:[%s1 + $0xb0] sm:$0xff]
    %v39 = vld [vmem:[%s1 + $0xb8] sm:$0xff]
    %v40 = vld [vmem:[%s1 + $0xc0] sm:$0xff]
    %v41 = vld [vmem:[%s1 + $0xc8] sm:$0xff]
    %v42 = vld [vmem:[%s1 + $0xd0] sm:$0xff]
    %v43 = vld [vmem:[%s1 + $0xd8] sm:$0xff]
    %v44 = vld [vmem:[%s1 + $0xe0] sm:$0xff]
    %v45 = vld [vmem:[%s1 + $0xe8] sm:$0xff]
    %v46 = vld [vmem:[%s1 + $0xf0] sm:$0xff]
    %v47 = vld [vmem:[%s1 + $0xf8] sm:$0xff]
    %v48 = vld [vmem:[%s2] sm:$0x3]
    %v50 = vlaneseq
    %v51 = vshrl.u32 %v50, 7
    %v52 = vsub.s32 0, %v51
    %v53 = vrot.slane %v48, %v52
    %v54 = vlaneseq
    %v55 = vshrl.u32 %v54, 7
    %v56 = vsub.s32 1, %v55
    %v57 = vrot.slane %v48, %v56
    %60 = vmatprep.subr.mxu0 %v17
    %61 = vmatpush1.msra.mxu0 %v16
    %62 = vmatprep.subr.mxu0 %v19
    %63 = vmatpush1.msra.mxu0 %v18
    %64 = vmatprep.subr.mxu0 %v21
    %65 = vmatpush1.msra.mxu0 %v20
    %66 = vmatprep.subr.mxu0 %v23
    %67 = vmatpush1.msra.mxu0 %v22
    %68 = vmatprep.subr.mxu0 %v25
    %69 = vmatpush1.msra.mxu0 %v24
    %70 = vmatprep.subr.mxu0 %v27
    %71 = vmatpush1.msra.mxu0 %v26
    %72 = vmatprep.subr.mxu0 %v29
    %73 = vmatpush1.msra.mxu0 %v28
    %74 = vmatprep.subr.mxu0 %v31
    %75 = vmatpush1.msra.mxu0 %v30
    %76 = vmatprep.subr.mxu0 %v33
    %77 = vmatpush1.msra.mxu0 %v32
    %78 = vmatprep.subr.mxu0 %v35
    %79 = vmatpush1.msra.mxu0 %v34
    %80 = vmatprep.subr.mxu0 %v37
    %81 = vmatpush1.msra.mxu0 %v36
    %82 = vmatprep.subr.mxu0 %v39
    %83 = vmatpush1.msra.mxu0 %v38
    %84 = vmatprep.subr.mxu0 %v41
    %85 = vmatpush1.msra.mxu0 %v40
    %86 = vmatprep.subr.mxu0 %v43
    %87 = vmatpush1.msra.mxu0 %v42
    %88 = vmatprep.subr.mxu0 %v45
    %89 = vmatpush1.msra.mxu0 %v44
    %90 = vmatprep.subr.mxu0 %v47
    %91 = vmatpush1.msra.mxu0 %v46
    %92 = vmatprep.subr.mxu0 0.0
    %93 = vmatpush1.msra.mxu0 0.0
    %94 = vmatprep.subr.mxu0 0.0
    %95 = vmatpush1.msra.mxu0 0.0
    %96 = vmatprep.subr.mxu0 0.0
    %97 = vmatpush1.msra.mxu0 0.0
    %98 = vmatprep.subr.mxu0 0.0
    %99 = vmatpush1.msra.mxu0 0.0
    %100 = vmatprep.subr.mxu0 0.0
    %101 = vmatpush1.msra.mxu0 0.0
    %102 = vmatprep.subr.mxu0 0.0
    %103 = vmatpush1.msra.mxu0 0.0
    %104 = vmatprep.subr.mxu0 0.0
    %105 = vmatpush1.msra.mxu0 0.0
    %106 = vmatprep.subr.mxu0 0.0
    %107 = vmatpush1.msra.mxu0 0.0
    %108 = vmatprep.subr.mxu0 0.0
    %109 = vmatpush1.msra.mxu0 0.0
    %110 = vmatprep.subr.mxu0 0.0
    %111 = vmatpush1.msra.mxu0 0.0
    %112 = vmatprep.subr.mxu0 0.0
    %113 = vmatpush1.msra.mxu0 0.0
    %114 = vmatprep.subr.mxu0 0.0
    %115 = vmatpush1.msra.mxu0 0.0
    %116 = vmatprep.subr.mxu0 0.0
    %117 = vmatpush1.msra.mxu0 0.0
    %118 = vmatprep.subr.mxu0 0.0
    %119 = vmatpush1.msra.mxu0 0.0
    %120 = vmatprep.subr.mxu0 0.0
    %121 = vmatpush1.msra.mxu0 0.0
    %122 = vmatprep.subr.mxu0 0.0
    %123 = vmatpush1.msra.mxu0 0.0
    %124 = vmatprep.mubr.f32.mxu0 0.0
    %125 = vmatmul.mubr.f32.gmra.mrb[0].mxu0 %v15
    %v126 = vpop.f32.mrb[0].mxu0
    %v127 = vadd.f32 %v53, %v126
    %v128 = vpop.f32.mrb[0].mxu0
    %v129 = vadd.f32 %v57, %v128
    %130 = vdwg.mxu0
    %v131 = vrcp.pop %v129
    %v132 = vmul.f32 1.0, %v131
    %vm133 = vcmp.ne.f32.partialorder %v132, %v132
    %v134 = vsel %vm133, 0.0, %v132
    %v135 = vmax.f32 %v134, -1000.0
    %v136 = vmin.f32 %v135, 1000.0
    %v137 = vmul.f32 %v127, %v136
    %v138 = vadd.f32 %v15, %v137
    %139 = vst [vmem:[#allocation2] sm:$0xff] %v138
    // Predicated region
    $region14: #{reciprocal_layer.1} parent=1 // pred_check
      _
    $region15: #{reciprocal_layer.1} parent=1 // pred_check_branch
      %141 = sbr.rel (0) target = $region17
    $region16: #{reciprocal_layer.1} parent=1 // pred_region
      %s143 = ssub.s32 128, 128
      %144 = vsyncadd [#allocation3], %s143
      %s146 = sshll.u32 [#allocation2], 4
      %s147 = int_to_ptr.vmem [resolvable:$true] %s146
      %149 = dma.vmem_to_hbm [thread:$0]  %s147, 128, %s3, [#allocation3]
    $region17: #{reciprocal_layer.1} parent=1 // pred_fallthru
      _
    // Predicated region
    $region18: #{reciprocal_layer.1} parent=1 // pred_check
      _
    $region19: #{reciprocal_layer.1} parent=1 // pred_check_branch
      %151 = sbr.rel (0) target = $region21
    $region20: #{reciprocal_layer.1} parent=1 // pred_region
      %152 = dma.done [#allocation3], 128
    $region21: #{reciprocal_layer.1} parent=1 // pred_fallthru
      _
    %153 = vsyncpa [#allocation3], 1

</llo_original>
